<compile_context>
chip_gen: v5e
topology: v5e:2x2
jax: 0.10.0
libtpu: 0.0.40
codegen_flags: <defaults>
</compile_context>

<pallas_src>
import jax
import jax.numpy as jnp
import numpy as np
from jax.experimental import pallas as pl
from jax.experimental.pallas import tpu as pltpu


def _round_up(x: int, m: int) -> int:
    return ((x + m - 1) // m) * m


def _make_graphconv_kernel(n_supports: int, max_step: int, matmul_dtype):
    """Per-call kernel: Chebyshev-style diffusion + one fused linear GEMM."""

    def kernel(x_ref, sup_ref, w_ref, b_ref, o_ref):
        # x_ref:   (B*D, N_pad)       diffusion state, batch folded into rows
        # sup_ref: (S, N_pad, N_pad)  pre-transposed, zero-padded supports
        # w_ref:   (B*O, M*B*D)       fused linear weight (block-diag over batch)
        # b_ref:   (B*O, 1)           bias per output row
        # o_ref:   (B*O, N_pad)       output, lane-dense along nodes
        x0 = x_ref[...]
        states = [x0]
        # NOTE: (x0, x1) intentionally carry across the support loop,
        # mirroring the torch reference exactly.
        if max_step > 0:
            for s in range(n_supports):
                sup = sup_ref[s].astype(matmul_dtype)      # (N_pad, N_pad) = S^T
                x1 = jnp.dot(x0.astype(matmul_dtype), sup,
                             preferred_element_type=jnp.float32)
                states.append(x1)
                for _k in range(2, max_step + 1):
                    x2 = 2.0 * jnp.dot(x1.astype(matmul_dtype), sup,
                                       preferred_element_type=jnp.float32) - x0
                    states.append(x2)
                    x1, x0 = x2, x1

        # One fused GEMM for the Linear over all metrics and all batches.
        # Sublane concat of 8-row (f32-tile aligned) pieces -> (M*B*D, N_pad).
        slab = states[0] if len(states) == 1 else jnp.concatenate(states, axis=0)
        out = jnp.dot(w_ref[...], slab, preferred_element_type=jnp.float32)
        o_ref[...] = out + b_ref[...]

    return kernel


def graph_conv_pallas(inputs, supports, weight, bias, max_step: int, *,
                      node_align: int = 128, matmul_dtype=jnp.float32,
                      single_buffer_constants: bool = True):
    """inputs: (B, N, D); supports: (S, N, N); weight: (O, D*M) torch layout;
    bias: (O,).  Returns (B, N, O) float32.

    matmul_dtype=jnp.bfloat16 optionally runs the diffusion matmuls in bf16
    (f32 accumulation) for v6e/v7x MXU peak; default keeps full f32.
    """
    B, N, D = inputs.shape
    S = int(supports.shape[0])
    M = max_step * S + 1
    O = weight.shape[0]
    assert weight.shape[1] == D * M

    f32 = jnp.float32
    n_pad = _round_up(N, node_align)

    # (B, N, D) -> (B*D, N_pad): row index = b*D + d, lane index = node.
    x_t = jnp.transpose(inputs.astype(f32), (0, 2, 1)).reshape(B * D, N)
    x_t = jnp.pad(x_t, ((0, 0), (0, n_pad - N)))

    # Supports pre-transposed so the diffusion is  x_t @ support^T.
    sup_t = jnp.pad(jnp.transpose(supports.astype(f32), (0, 2, 1)),
                    ((0, 0), (0, n_pad - N), (0, n_pad - N)))

    # torch flattening: feature index = d*M + m  ->  W_eff[m,d,o] = weight[o, d*M+m]
    w_eff = jnp.transpose(weight.astype(f32).reshape(O, D, M), (2, 1, 0))  # (M,D,O)
    # Fused weight, block-diagonal over the folded batch:
    #   W_big[(b,o), (m,b',d)] = W_eff[m,d,o] * delta(b, b')
    w_big = jnp.einsum("mdo,bc->combd", w_eff, jnp.eye(B, dtype=f32))
    w_big = w_big.reshape(B * O, M * B * D)
    bias_col = jnp.tile(bias.astype(f32), (B,)).reshape(B * O, 1)

    kernel = _make_graphconv_kernel(S, max_step, matmul_dtype)

    def build_call(use_single_buffer: bool):
        const_kw = dict(pipeline_mode=pl.Buffered(1)) if use_single_buffer else {}
        grid_spec = pl.GridSpec(
            grid=(1,),  # whole folded batch handled in a single step
            in_specs=[
                pl.BlockSpec((B * D, n_pad), lambda i: (i, 0)),
                pl.BlockSpec((S, n_pad, n_pad), lambda i: (0, 0, 0), **const_kw),
                pl.BlockSpec((B * O, M * B * D), lambda i: (0, 0), **const_kw),
                pl.BlockSpec((B * O, 1), lambda i: (0, 0), **const_kw),
            ],
            out_specs=pl.BlockSpec((B * O, n_pad), lambda i: (i, 0)),
        )
        return pl.pallas_call(
            kernel,
            out_shape=jax.ShapeDtypeStruct((B * O, n_pad), f32),
            grid_spec=grid_spec,
            compiler_params=pltpu.CompilerParams(
                dimension_semantics=("parallel",)),
        )

    if single_buffer_constants:
        try:
            out_t = build_call(True)(x_t, sup_t, w_big, bias_col)
        except Exception:
            # Fallback: this JAX build does not accept pipeline_mode on
            # top-level pallas_call BlockSpecs; identical semantics, just
            # default double-buffering of the constant blocks.
            out_t = build_call(False)(x_t, sup_t, w_big, bias_col)
    else:
        out_t = build_call(False)(x_t, sup_t, w_big, bias_col)

    # (B*O, N_pad) -> (B, N, O)
    return out_t[:, :N].reshape(B, O, N).transpose(0, 2, 1)


def graph_conv_reference(inputs, supports_list, weight, bias, max_step: int):
    """Pure-JAX transcription of the torch forward, for verification."""
    b, n, d = inputs.shape
    x0 = inputs
    xs = [x0]
    if max_step > 0:
        for support in supports_list:
            x1 = jnp.einsum("ij,bjd->bid", support, x0)
            xs.append(x1)
            for _k in range(2, max_step + 1):
                x2 = 2.0 * jnp.einsum("ij,bjd->bid", support, x1) - x0
                xs.append(x2)
                x1, x0 = x2, x1
    x = jnp.stack(xs, axis=0)                             # (M, b, n, d)
    x = jnp.transpose(x, (1, 2, 3, 0)).reshape(b, n, -1)  # (b, n, d*M)
    return x @ weight.T + bias


if __name__ == "__main__":
    # Small shapes consistent with the module.
    B, N, D, O = 2, 16, 4, 8          # batch, num_nodes, input_dim, output_dim
    S, MAX_STEP = 2, 2                # n_supports, max_step
    M = MAX_STEP * S + 1              # num_metrics = 5

    key = jax.random.PRNGKey(0)
    k_in, k_sup, k_w, k_b = jax.random.split(key, 4)

    inputs = jax.random.normal(k_in, (B, N, D), dtype=jnp.float32)
    # row-normalized random supports (like diffusion transition matrices)
    sup_raw = jax.random.uniform(k_sup, (S, N, N), dtype=jnp.float32)
    supports = sup_raw / jnp.sum(sup_raw, axis=-1, keepdims=True)

    # nn.Linear(D*M, O) style init, deterministic here
    bound = 1.0 / np.sqrt(D * M)
    weight = jax.random.uniform(k_w, (O, D * M), minval=-bound, maxval=bound,
                                dtype=jnp.float32)
    bias = jax.random.uniform(k_b, (O,), minval=-bound, maxval=bound,
                              dtype=jnp.float32)

    out = graph_conv_pallas(inputs, supports, weight, bias, MAX_STEP)
    out = jax.block_until_ready(out)

    ref = graph_conv_reference(inputs, [supports[i] for i in range(S)],
                               weight, bias, MAX_STEP)
    np.testing.assert_allclose(np.asarray(out), np.asarray(ref),
                               rtol=1e-4, atol=1e-5)

    print("KERNEL_OK")
</pallas_src>

<mosaic_0001>
module attributes {stable_mosaic.version = 11 : i64} {
  func.func @kernel(%arg0: i32, %arg1: memref<8x128xf32, #tpu.memory_space<vmem>>, %arg2: memref<2x128x128xf32, #tpu.memory_space<vmem>>, %arg3: memref<16x40xf32, #tpu.memory_space<vmem>>, %arg4: memref<16x1xf32, #tpu.memory_space<vmem>>, %arg5: memref<16x128xf32, #tpu.memory_space<vmem>>) attributes {dimension_semantics = [#tpu.dimension_semantics<parallel>], iteration_bounds = array<i64: 1>, scalar_prefetch = 0 : i64, scratch_operands = 0 : i64, tpu.core_type = #tpu.core_type<tc>, window_params = [{transform_indices = @transform_0, window_bounds = array<i64: 8, 128>}, {pipeline_mode = #tpu.pipeline_mode<synchronous>, transform_indices = @transform_1, window_bounds = array<i64: 2, 128, 128>}, {pipeline_mode = #tpu.pipeline_mode<synchronous>, transform_indices = @transform_2, window_bounds = array<i64: 16, 40>}, {pipeline_mode = #tpu.pipeline_mode<synchronous>, transform_indices = @transform_3, window_bounds = array<i64: 16, 1>}, {transform_indices = @transform_4, window_bounds = array<i64: 16, 128>}]} {
    %c0 = arith.constant 0 : index
    %c0_0 = arith.constant 0 : index
    %0 = vector.load %arg1[%c0, %c0_0] : memref<8x128xf32, #tpu.memory_space<vmem>>, vector<8x128xf32>
    %c0_1 = arith.constant 0 : index
    %c0_2 = arith.constant 0 : index
    %c0_3 = arith.constant 0 : index
    %1 = vector.load %arg2[%c0_1, %c0_2, %c0_3] : memref<2x128x128xf32, #tpu.memory_space<vmem>>, vector<1x128x128xf32>
    %2 = vector.shape_cast %1 : vector<1x128x128xf32> to vector<128x128xf32>
    %cst = arith.constant dense<0.000000e+00> : vector<8x128xf32>
    %3 = tpu.matmul %0, %2, %cst {dimension_numbers = #tpu.dot_dimension_numbers<[1], [0], [0], [1], [0, 0, 1, 1], [], []>} : vector<8x128xf32>, vector<128x128xf32>, vector<8x128xf32> -> vector<8x128xf32>
    %cst_4 = arith.constant dense<0.000000e+00> : vector<8x128xf32>
    %4 = tpu.matmul %3, %2, %cst_4 {dimension_numbers = #tpu.dot_dimension_numbers<[1], [0], [0], [1], [0, 0, 1, 1], [], []>} : vector<8x128xf32>, vector<128x128xf32>, vector<8x128xf32> -> vector<8x128xf32>
    %cst_5 = arith.constant 2.000000e+00 : f32
    %5 = vector.broadcast %cst_5 : f32 to vector<8x128xf32>
    %6 = arith.mulf %5, %4 : vector<8x128xf32>
    %7 = arith.subf %6, %0 : vector<8x128xf32>
    %c1 = arith.constant 1 : index
    %c0_6 = arith.constant 0 : index
    %c0_7 = arith.constant 0 : index
    %8 = vector.load %arg2[%c1, %c0_6, %c0_7] : memref<2x128x128xf32, #tpu.memory_space<vmem>>, vector<1x128x128xf32>
    %9 = vector.shape_cast %8 : vector<1x128x128xf32> to vector<128x128xf32>
    %cst_8 = arith.constant dense<0.000000e+00> : vector<8x128xf32>
    %10 = tpu.matmul %3, %9, %cst_8 {dimension_numbers = #tpu.dot_dimension_numbers<[1], [0], [0], [1], [0, 0, 1, 1], [], []>} : vector<8x128xf32>, vector<128x128xf32>, vector<8x128xf32> -> vector<8x128xf32>
    %cst_9 = arith.constant dense<0.000000e+00> : vector<8x128xf32>
    %11 = tpu.matmul %10, %9, %cst_9 {dimension_numbers = #tpu.dot_dimension_numbers<[1], [0], [0], [1], [0, 0, 1, 1], [], []>} : vector<8x128xf32>, vector<128x128xf32>, vector<8x128xf32> -> vector<8x128xf32>
    %cst_10 = arith.constant 2.000000e+00 : f32
    %12 = vector.broadcast %cst_10 : f32 to vector<8x128xf32>
    %13 = arith.mulf %12, %11 : vector<8x128xf32>
    %14 = arith.subf %13, %3 : vector<8x128xf32>
    %15 = tpu.concatenate %0, %3, %7, %10, %14 in 0 : vector<8x128xf32>, vector<8x128xf32>, vector<8x128xf32>, vector<8x128xf32>, vector<8x128xf32> -> vector<40x128xf32>
    %c0_11 = arith.constant 0 : index
    %c0_12 = arith.constant 0 : index
    %16 = vector.load %arg3[%c0_11, %c0_12] : memref<16x40xf32, #tpu.memory_space<vmem>>, vector<16x40xf32>
    %cst_13 = arith.constant dense<0.000000e+00> : vector<16x128xf32>
    %17 = tpu.matmul %16, %15, %cst_13 {dimension_numbers = #tpu.dot_dimension_numbers<[1], [0], [0], [1], [0, 0, 1, 1], [], []>} : vector<16x40xf32>, vector<40x128xf32>, vector<16x128xf32> -> vector<16x128xf32>
    %c0_14 = arith.constant 0 : index
    %c0_15 = arith.constant 0 : index
    %18 = vector.load %arg4[%c0_14, %c0_15] : memref<16x1xf32, #tpu.memory_space<vmem>>, vector<16x1xf32>
    %19 = vector.broadcast %18 : vector<16x1xf32> to vector<16x128xf32>
    %20 = arith.addf %17, %19 : vector<16x128xf32>
    %c0_16 = arith.constant 0 : index
    %c0_17 = arith.constant 0 : index
    %21 = vector.load %arg5[%c0_16, %c0_17] : memref<16x128xf32, #tpu.memory_space<vmem>>, vector<16x128xf32>
    tpu.vector_store %arg5[%c0_16, %c0_17], %20 {strides = array<i32>} : memref<16x128xf32, #tpu.memory_space<vmem>>, vector<16x128xf32>,
    return
  }
  func.func @transform_0(%arg0: i32) -> (i32, i32) {
    %c0_i32 = arith.constant 0 : i32
    %c0_i32_0 = arith.constant 0 : i32
    return %arg0, %c0_i32 : i32, i32
  }
  func.func @transform_1(%arg0: i32) -> (i32, i32, i32) {
    %c0_i32 = arith.constant 0 : i32
    %c0_i32_0 = arith.constant 0 : i32
    %c0_i32_1 = arith.constant 0 : i32
    %c0_i32_2 = arith.constant 0 : i32
    return %c0_i32, %c0_i32_0, %c0_i32_1 : i32, i32, i32
  }
  func.func @transform_2(%arg0: i32) -> (i32, i32) {
    %c0_i32 = arith.constant 0 : i32
    %c0_i32_0 = arith.constant 0 : i32
    %c0_i32_1 = arith.constant 0 : i32
    return %c0_i32, %c0_i32_0 : i32, i32
  }
  func.func @transform_3(%arg0: i32) -> (i32, i32) {
    %c0_i32 = arith.constant 0 : i32
    %c0_i32_0 = arith.constant 0 : i32
    %c0_i32_1 = arith.constant 0 : i32
    return %c0_i32, %c0_i32_0 : i32, i32
  }
  func.func @transform_4(%arg0: i32) -> (i32, i32) {
    %c0_i32 = arith.constant 0 : i32
    %c0_i32_0 = arith.constant 0 : i32
    return %arg0, %c0_i32 : i32, i32
  }
}

module attributes {stable_mosaic.version = 11 : i64} {
  func.func @kernel(%arg0: i32, %arg1: memref<8x128xf32, #tpu.memory_space<vmem>>, %arg2: memref<2x128x128xf32, #tpu.memory_space<vmem>>, %arg3: memref<16x40xf32, #tpu.memory_space<vmem>>, %arg4: memref<16x1xf32, #tpu.memory_space<vmem>>, %arg5: memref<16x128xf32, #tpu.memory_space<vmem>>) attributes {dimension_semantics = [#tpu.dimension_semantics<parallel>], iteration_bounds = array<i64: 1>, scalar_prefetch = 0 : i64, scratch_operands = 0 : i64, tpu.core_type = #tpu.core_type<tc>, window_params = [{transform_indices = @transform_0, window_bounds = array<i64: 8, 128>}, {pipeline_mode = #tpu.pipeline_mode<synchronous>, transform_indices = @transform_1, window_bounds = array<i64: 2, 128, 128>}, {pipeline_mode = #tpu.pipeline_mode<synchronous>, transform_indices = @transform_2, window_bounds = array<i64: 16, 40>}, {pipeline_mode = #tpu.pipeline_mode<synchronous>, transform_indices = @transform_3, window_bounds = array<i64: 16, 1>}, {transform_indices = @transform_4, window_bounds = array<i64: 16, 128>}]} {
    %c0 = arith.constant 0 : index
    %c0_0 = arith.constant 0 : index
    %0 = vector.load %arg1[%c0, %c0_0] : memref<8x128xf32, #tpu.memory_space<vmem>>, vector<8x128xf32>
    %c0_1 = arith.constant 0 : index
    %c0_2 = arith.constant 0 : index
    %c0_3 = arith.constant 0 : index
    %1 = vector.load %arg2[%c0_1, %c0_2, %c0_3] : memref<2x128x128xf32, #tpu.memory_space<vmem>>, vector<1x128x128xf32>
    %2 = vector.shape_cast %1 : vector<1x128x128xf32> to vector<128x128xf32>
    %cst = arith.constant dense<0.000000e+00> : vector<8x128xf32>
    %3 = tpu.matmul %0, %2, %cst {dimension_numbers = #tpu.dot_dimension_numbers<[1], [0], [0], [1], [0, 0, 1, 1], [], []>} : vector<8x128xf32>, vector<128x128xf32>, vector<8x128xf32> -> vector<8x128xf32>
    %cst_4 = arith.constant dense<0.000000e+00> : vector<8x128xf32>
    %4 = tpu.matmul %3, %2, %cst_4 {dimension_numbers = #tpu.dot_dimension_numbers<[1], [0], [0], [1], [0, 0, 1, 1], [], []>} : vector<8x128xf32>, vector<128x128xf32>, vector<8x128xf32> -> vector<8x128xf32>
    %cst_5 = arith.constant 2.000000e+00 : f32
    %5 = vector.broadcast %cst_5 : f32 to vector<8x128xf32>
    %6 = arith.mulf %5, %4 : vector<8x128xf32>
    %7 = arith.subf %6, %0 : vector<8x128xf32>
    %c1 = arith.constant 1 : index
    %c0_6 = arith.constant 0 : index
    %c0_7 = arith.constant 0 : index
    %8 = vector.load %arg2[%c1, %c0_6, %c0_7] : memref<2x128x128xf32, #tpu.memory_space<vmem>>, vector<1x128x128xf32>
    %9 = vector.shape_cast %8 : vector<1x128x128xf32> to vector<128x128xf32>
    %cst_8 = arith.constant dense<0.000000e+00> : vector<8x128xf32>
    %10 = tpu.matmul %3, %9, %cst_8 {dimension_numbers = #tpu.dot_dimension_numbers<[1], [0], [0], [1], [0, 0, 1, 1], [], []>} : vector<8x128xf32>, vector<128x128xf32>, vector<8x128xf32> -> vector<8x128xf32>
    %cst_9 = arith.constant dense<0.000000e+00> : vector<8x128xf32>
    %11 = tpu.matmul %10, %9, %cst_9 {dimension_numbers = #tpu.dot_dimension_numbers<[1], [0], [0], [1], [0, 0, 1, 1], [], []>} : vector<8x128xf32>, vector<128x128xf32>, vector<8x128xf32> -> vector<8x128xf32>
    %cst_10 = arith.constant 2.000000e+00 : f32
    %12 = vector.broadcast %cst_10 : f32 to vector<8x128xf32>
    %13 = arith.mulf %12, %11 : vector<8x128xf32>
    %14 = arith.subf %13, %3 : vector<8x128xf32>
    %15 = tpu.concatenate %0, %3, %7, %10, %14 in 0 : vector<8x128xf32>, vector<8x128xf32>, vector<8x128xf32>, vector<8x128xf32>, vector<8x128xf32> -> vector<40x128xf32>
    %c0_11 = arith.constant 0 : index
    %c0_12 = arith.constant 0 : index
    %16 = vector.load %arg3[%c0_11, %c0_12] : memref<16x40xf32, #tpu.memory_space<vmem>>, vector<16x40xf32>
    %cst_13 = arith.constant dense<0.000000e+00> : vector<16x128xf32>
    %17 = tpu.matmul %16, %15, %cst_13 {dimension_numbers = #tpu.dot_dimension_numbers<[1], [0], [0], [1], [0, 0, 1, 1], [], []>} : vector<16x40xf32>, vector<40x128xf32>, vector<16x128xf32> -> vector<16x128xf32>
    %c0_14 = arith.constant 0 : index
    %c0_15 = arith.constant 0 : index
    %18 = vector.load %arg4[%c0_14, %c0_15] : memref<16x1xf32, #tpu.memory_space<vmem>>, vector<16x1xf32>
    %19 = vector.broadcast %18 : vector<16x1xf32> to vector<16x128xf32>
    %20 = arith.addf %17, %19 : vector<16x128xf32>
    %c0_16 = arith.constant 0 : index
    %c0_17 = arith.constant 0 : index
    %21 = vector.load %arg5[%c0_16, %c0_17] : memref<16x128xf32, #tpu.memory_space<vmem>>, vector<16x128xf32>
    tpu.vector_store %arg5[%c0_16, %c0_17], %20 {strides = array<i32>} : memref<16x128xf32, #tpu.memory_space<vmem>>, vector<16x128xf32>,
    return
  }
  func.func @transform_0(%arg0: i32) -> (i32, i32) {
    %c0_i32 = arith.constant 0 : i32
    %c0_i32_0 = arith.constant 0 : i32
    return %arg0, %c0_i32 : i32, i32
  }
  func.func @transform_1(%arg0: i32) -> (i32, i32, i32) {
    %c0_i32 = arith.constant 0 : i32
    %c0_i32_0 = arith.constant 0 : i32
    %c0_i32_1 = arith.constant 0 : i32
    %c0_i32_2 = arith.constant 0 : i32
    return %c0_i32, %c0_i32_0, %c0_i32_1 : i32, i32, i32
  }
  func.func @transform_2(%arg0: i32) -> (i32, i32) {
    %c0_i32 = arith.constant 0 : i32
    %c0_i32_0 = arith.constant 0 : i32
    %c0_i32_1 = arith.constant 0 : i32
    return %c0_i32, %c0_i32_0 : i32, i32
  }
  func.func @transform_3(%arg0: i32) -> (i32, i32) {
    %c0_i32 = arith.constant 0 : i32
    %c0_i32_0 = arith.constant 0 : i32
    %c0_i32_1 = arith.constant 0 : i32
    return %c0_i32, %c0_i32_0 : i32, i32
  }
  func.func @transform_4(%arg0: i32) -> (i32, i32) {
    %c0_i32 = arith.constant 0 : i32
    %c0_i32_0 = arith.constant 0 : i32
    return %arg0, %c0_i32 : i32, i32
  }
}

</mosaic_0001>

<llo_original>
// kernel: tpu_custom_call.1
$region0: #{tpu_custom_call.1}
  #allocation0 [shape = 'u32[]', space=smem, size = 0x4, offset = 0x4, fixed_abs, tag = 'smem constant byte address 0x4 - core index']
  #allocation1 [shape = 'u32[72,128]{1,0:T(1,128)}', space=vmem, size = 0x9000, scoped, tag = 'internal scratch']
  %s0 = inlined_call_operand.hbm [shape: f32[8,128], index: 0, kind: input, shape index: {}]
  %s1 = inlined_call_operand.hbm [shape: f32[2,128,128], index: 1, kind: input, shape index: {}]
  %s2 = inlined_call_operand.vmem [shape: f32[16,40], index: 2, kind: input, shape index: {}]
  %s3 = inlined_call_operand.vmem [shape: f32[16,1], index: 3, kind: input, shape index: {}]
  %s4 = inlined_call_operand.hbm [shape: f32[16,128], index: 4, kind: output, shape index: {}]
  %s5 = sld [smem:[#allocation0]]
  $region34: #{tpu_custom_call.1} parent=0
    _
  %s7 = ssub.s32 1, %s5
  %s8 = scalar_select 0, %s7, %s5
  $region1: #{tpu_custom_call.1} parent=0
    #allocation2 [shape = 'u8[4096]{0}', space=vmem, size = 0x1000, scoped, tag = 'input window, operand 0, single buffered']
    #allocation3 [shape = 's32[1]{0}', space=sflag, size = 0x4, scoped, tag = 'scoped memory for tpu_custom_call.1']
    #allocation4 [shape = 's32[1]{0}', space=sflag, size = 0x4, scoped, tag = 'scoped memory for tpu_custom_call.1']
    #allocation5 [shape = 'u8[131072]{0}', space=vmem, size = 0x20000, scoped, tag = 'input window, operand 1, single buffered']
    #allocation6 [shape = 's32[1]{0}', space=sflag, size = 0x4, scoped, tag = 'scoped memory for tpu_custom_call.1']
    #allocation7 [shape = 'u8[8192]{0}', space=vmem, size = 0x2000, scoped, tag = 'output window, operand 0, single buffered']
    %9 = vsyncpa [#allocation3], 0
    %10 = vsyncpa [#allocation6], 0
    %11 = vsyncpa [#allocation4], 0
    // Predicated region
    $region2: #{tpu_custom_call.1} parent=1 // pred_check
      _
    $region3: #{tpu_custom_call.1} parent=1 // pred_check_branch
      %13 = sbr.rel (0) target = $region5
    $region4: #{tpu_custom_call.1} parent=1 // pred_region
      %15 = vsyncadd [#allocation3], 0
      %s17 = sshll.u32 %s0, 4
      %s18 = int_to_ptr.hbm [resolvable:$true] %s17
      %s19 = sshll.u32 [#allocation2], 4
      %s20 = int_to_ptr.vmem [resolvable:$true] %s19
      %22 = dma.hbm_to_vmem [thread:$0]  %s18, 128, %s20, [#allocation3]
    $region5: #{tpu_custom_call.1} parent=1 // pred_fallthru
      _
    // Predicated region
    $region6: #{tpu_custom_call.1} parent=1 // pred_check
      _
    $region7: #{tpu_custom_call.1} parent=1 // pred_check_branch
      %24 = sbr.rel (0) target = $region9
    $region8: #{tpu_custom_call.1} parent=1 // pred_region
      %26 = vsyncadd [#allocation6], 0
      %s27 = sshll.u32 %s1, 4
      %s28 = int_to_ptr.hbm [resolvable:$true] %s27
      %s29 = sshll.u32 [#allocation5], 4
      %s30 = int_to_ptr.vmem [resolvable:$true] %s29
      %35 = dma.hbm_to_vmem [thread:$0]  %s28, 4096, %s30, [#allocation6], 128, 128, 8
    $region9: #{tpu_custom_call.1} parent=1 // pred_fallthru
      _
    // Predicated region
    $region10: #{tpu_custom_call.1} parent=1 // pred_check
      _
    $region11: #{tpu_custom_call.1} parent=1 // pred_check_branch
      %37 = sbr.rel (0) target = $region13
    $region12: #{tpu_custom_call.1} parent=1 // pred_region
      _
    $region13: #{tpu_custom_call.1} parent=1 // pred_fallthru
      _
    // Predicated region
    $region14: #{tpu_custom_call.1} parent=1 // pred_check
      _
    $region15: #{tpu_custom_call.1} parent=1 // pred_check_branch
      %39 = sbr.rel (0) target = $region17
    $region16: #{tpu_custom_call.1} parent=1 // pred_region
      _
    $region17: #{tpu_custom_call.1} parent=1 // pred_fallthru
      _
    // Predicated region
    $region18: #{tpu_custom_call.1} parent=1 // pred_check
      _
    $region19: #{tpu_custom_call.1} parent=1 // pred_check_branch
      %41 = sbr.rel (0) target = $region21
    $region20: #{tpu_custom_call.1} parent=1 // pred_region
      %43 = dma.done [#allocation3], 128
    $region21: #{tpu_custom_call.1} parent=1 // pred_fallthru
      _
    // Predicated region
    $region22: #{tpu_custom_call.1} parent=1 // pred_check
      _
    $region23: #{tpu_custom_call.1} parent=1 // pred_check_branch
      %45 = sbr.rel (0) target = $region25
    $region24: #{tpu_custom_call.1} parent=1 // pred_region
      %47 = dma.done [#allocation6], 4096
    $region25: #{tpu_custom_call.1} parent=1 // pred_fallthru
      _
    %v48 = vld [vmem:[#allocation2] sm:$0xff]
    %v49 = vld [vmem:[#allocation5] sm:$0xff]
    %v50 = vld [vmem:[#allocation5 + $0x8] sm:$0xff]
    %v51 = vld [vmem:[#allocation5 + $0x10] sm:$0xff]
    %v52 = vld [vmem:[#allocation5 + $0x18] sm:$0xff]
    %v53 = vld [vmem:[#allocation5 + $0x20] sm:$0xff]
    %v54 = vld [vmem:[#allocation5 + $0x28] sm:$0xff]
    %v55 = vld [vmem:[#allocation5 + $0x30] sm:$0xff]
    %v56 = vld [vmem:[#allocation5 + $0x38] sm:$0xff]
    %v57 = vld [vmem:[#allocation5 + $0x40] sm:$0xff]
    %v58 = vld [vmem:[#allocation5 + $0x48] sm:$0xff]
    %v59 = vld [vmem:[#allocation5 + $0x50] sm:$0xff]
    %v60 = vld [vmem:[#allocation5 + $0x58] sm:$0xff]
    %v61 = vld [vmem:[#allocation5 + $0x60] sm:$0xff]
    %v62 = vld [vmem:[#allocation5 + $0x68] sm:$0xff]
    %v63 = vld [vmem:[#allocation5 + $0x70] sm:$0xff]
    %v64 = vld [vmem:[#allocation5 + $0x78] sm:$0xff]
    %65 = vmatpush.msra.mxu0 %v64
    %66 = vmatpush.msra.mxu0 %v63
    %67 = vmatpush.msra.mxu0 %v62
    %68 = vmatpush.msra.mxu0 %v61
    %69 = vmatpush.msra.mxu0 %v60
    %70 = vmatpush.msra.mxu0 %v59
    %71 = vmatpush.msra.mxu0 %v58
    %72 = vmatpush.msra.mxu0 %v57
    %73 = vmatpush.msra.mxu0 %v56
    %74 = vmatpush.msra.mxu0 %v55
    %75 = vmatpush.msra.mxu0 %v54
    %76 = vmatpush.msra.mxu0 %v53
    %77 = vmatpush.msra.mxu0 %v52
    %78 = vmatpush.msra.mxu0 %v51
    %79 = vmatpush.msra.mxu0 %v50
    %80 = vmatpush.msra.mxu0 %v49
    %81 = vmatmul.f32.gmra.mxu0 %v48
    %v82 = vpop.f32.mrf.mxu0
    %v83 = vadd.f32 0.0, %v82
    %84 = vdwg.mxu0
    %85 = vmatpush.msra.mxu0 %v64
    %86 = vmatpush.msra.mxu0 %v63
    %87 = vmatpush.msra.mxu0 %v62
    %88 = vmatpush.msra.mxu0 %v61
    %89 = vmatpush.msra.mxu0 %v60
    %90 = vmatpush.msra.mxu0 %v59
    %91 = vmatpush.msra.mxu0 %v58
    %92 = vmatpush.msra.mxu0 %v57
    %93 = vmatpush.msra.mxu0 %v56
    %94 = vmatpush.msra.mxu0 %v55
    %95 = vmatpush.msra.mxu0 %v54
    %96 = vmatpush.msra.mxu0 %v53
    %97 = vmatpush.msra.mxu0 %v52
    %98 = vmatpush.msra.mxu0 %v51
    %99 = vmatpush.msra.mxu0 %v50
    %100 = vmatpush.msra.mxu0 %v49
    %101 = vmatmul.f32.gmra.mxu0 %v83
    %v102 = vpop.f32.mrf.mxu0
    %v103 = vadd.f32 0.0, %v102
    %104 = vdwg.mxu0
    %v105 = vmul.f32 %v103, 2.0
    %v106 = vsub.f32 %v105, %v48
    %s107 = scalar_lea.vmem [#allocation5], 128
    %v108 = vld [vmem:[%s107] sm:$0xff]
    %v109 = vld [vmem:[%s107 + $0x8] sm:$0xff]
    %v110 = vld [vmem:[%s107 + $0x10] sm:$0xff]
    %v111 = vld [vmem:[%s107 + $0x18] sm:$0xff]
    %v112 = vld [vmem:[%s107 + $0x20] sm:$0xff]
    %v113 = vld [vmem:[%s107 + $0x28] sm:$0xff]
    %v114 = vld [vmem:[%s107 + $0x30] sm:$0xff]
    %v115 = vld [vmem:[%s107 + $0x38] sm:$0xff]
    %v116 = vld [vmem:[%s107 + $0x40] sm:$0xff]
    %v117 = vld [vmem:[%s107 + $0x48] sm:$0xff]
    %v118 = vld [vmem:[%s107 + $0x50] sm:$0xff]
    %v119 = vld [vmem:[%s107 + $0x58] sm:$0xff]
    %v120 = vld [vmem:[%s107 + $0x60] sm:$0xff]
    %v121 = vld [vmem:[%s107 + $0x68] sm:$0xff]
    %v122 = vld [vmem:[%s107 + $0x70] sm:$0xff]
    %v123 = vld [vmem:[%s107 + $0x78] sm:$0xff]
    %124 = vmatpush.msra.mxu0 %v123
    %125 = vmatpush.msra.mxu0 %v122
    %126 = vmatpush.msra.mxu0 %v121
    %127 = vmatpush.msra.mxu0 %v120
    %128 = vmatpush.msra.mxu0 %v119
    %129 = vmatpush.msra.mxu0 %v118
    %130 = vmatpush.msra.mxu0 %v117
    %131 = vmatpush.msra.mxu0 %v116
    %132 = vmatpush.msra.mxu0 %v115
    %133 = vmatpush.msra.mxu0 %v114
    %134 = vmatpush.msra.mxu0 %v113
    %135 = vmatpush.msra.mxu0 %v112
    %136 = vmatpush.msra.mxu0 %v111
    %137 = vmatpush.msra.mxu0 %v110
    %138 = vmatpush.msra.mxu0 %v109
    %139 = vmatpush.msra.mxu0 %v108
    %140 = vmatmul.f32.gmra.mxu0 %v83
    %v141 = vpop.f32.mrf.mxu0
    %v142 = vadd.f32 0.0, %v141
    %143 = vdwg.mxu0
    %144 = vmatpush.msra.mxu0 %v123
    %145 = vmatpush.msra.mxu0 %v122
    %146 = vmatpush.msra.mxu0 %v121
    %147 = vmatpush.msra.mxu0 %v120
    %148 = vmatpush.msra.mxu0 %v119
    %149 = vmatpush.msra.mxu0 %v118
    %150 = vmatpush.msra.mxu0 %v117
    %151 = vmatpush.msra.mxu0 %v116
    %152 = vmatpush.msra.mxu0 %v115
    %153 = vmatpush.msra.mxu0 %v114
    %154 = vmatpush.msra.mxu0 %v113
    %155 = vmatpush.msra.mxu0 %v112
    %156 = vmatpush.msra.mxu0 %v111
    %157 = vmatpush.msra.mxu0 %v110
    %158 = vmatpush.msra.mxu0 %v109
    %159 = vmatpush.msra.mxu0 %v108
    %160 = vmatmul.f32.gmra.mxu0 %v142
    %v161 = vpop.f32.mrf.mxu0
    %v162 = vadd.f32 0.0, %v161
    %163 = vdwg.mxu0
    %v164 = vmul.f32 %v162, 2.0
    %v165 = vsub.f32 %v164, %v83
    %v166 = vld [vmem:[%s2] sm:$0xff]
    %v167 = vld [vmem:[%s2 + $0x8] sm:$0xff]
    %v168 = vld [vmem:[%s3] sm:$0xff]
    %v169 = vld [vmem:[%s3 + $0x8] sm:$0xff]
    %171 = vset.pattern.permute.xlu0 0
    %172 = vperm.xlu0 %171, %v168
    %v173 = vpop.permute.xlu0 %172
    %176 = vset.pattern.permute.xlu0 0
    %177 = vperm.xlu0 %176, %v169
    %v178 = vpop.permute.xlu0 %177
    %vm180 = vcmask 326656
    %v182 = vsel %vm180, %v166, 0
    %v185 = vsel %vm180, %v167, 0
    %187 = vmatpush.msra.mxu0 0.0
    %188 = vmatpush.msra.mxu0 0.0
    %189 = vmatpush.msra.mxu0 0.0
    %190 = vmatpush.msra.mxu0 0.0
    %191 = vmatpush.msra.mxu0 0.0
    %192 = vmatpush.msra.mxu0 0.0
    %193 = vmatpush.msra.mxu0 0.0
    %194 = vmatpush.msra.mxu0 0.0
    %195 = vmatpush.msra.mxu0 0.0
    %196 = vmatpush.msra.mxu0 0.0
    %197 = vmatpush.msra.mxu0 0.0
    %198 = vmatpush.msra.mxu0 %v165
    %199 = vmatpush.msra.mxu0 %v142
    %200 = vmatpush.msra.mxu0 %v106
    %201 = vmatpush.msra.mxu0 %v83
    %202 = vmatpush.msra.mxu0 %v48
    %203 = vmatmul.f32.gmra.mxu0 %v182
    %v204 = vpop.f32.mrf.mxu0
    %v205 = vadd.f32 %v173, %v204
    %206 = vmatmul.f32.gmra.mxu0 %v185
    %v207 = vpop.f32.mrf.mxu0
    %v208 = vadd.f32 %v178, %v207
    %209 = vdwg.mxu0
    %210 = vst [vmem:[#allocation7] sm:$0xff] %v205
    %211 = vst [vmem:[#allocation7 + $0x8] sm:$0xff] %v208
    // Predicated region
    $region26: #{tpu_custom_call.1} parent=1 // pred_check
      _
    $region27: #{tpu_custom_call.1} parent=1 // pred_check_branch
      %213 = sbr.rel (0) target = $region29
    $region28: #{tpu_custom_call.1} parent=1 // pred_region
      %215 = vsyncadd [#allocation4], 0
      %s216 = sshll.u32 [#allocation7], 4
      %s217 = int_to_ptr.vmem [resolvable:$true] %s216
      %s218 = sshll.u32 %s4, 4
      %s219 = int_to_ptr.hbm [resolvable:$true] %s218
      %224 = dma.vmem_to_hbm [thread:$0]  %s217, 256, %s219, [#allocation4], 128, 128, 8
    $region29: #{tpu_custom_call.1} parent=1 // pred_fallthru
      _
    // Predicated region
    $region30: #{tpu_custom_call.1} parent=1 // pred_check
      _
    $region31: #{tpu_custom_call.1} parent=1 // pred_check_branch
      %226 = sbr.rel (0) target = $region33
    $region32: #{tpu_custom_call.1} parent=1 // pred_region
      %228 = dma.done [#allocation4], 256
    $region33: #{tpu_custom_call.1} parent=1 // pred_fallthru
      _
    %229 = vsyncpa [#allocation3], 1
    %230 = vsyncpa [#allocation6], 1
    %231 = vsyncpa [#allocation4], 1

// kernel: tpu_custom_call.1
$region0: #{tpu_custom_call.1}
  #allocation0 [shape = 'u32[]', space=smem, size = 0x4, offset = 0x4, fixed_abs, tag = 'smem constant byte address 0x4 - core index']
  #allocation1 [shape = 'u32[72,128]{1,0:T(1,128)}', space=vmem, size = 0x9000, scoped, tag = 'internal scratch']
  %s0 = inlined_call_operand.hbm [shape: f32[8,128], index: 0, kind: input, shape index: {}]
  %s1 = inlined_call_operand.hbm [shape: f32[2,128,128], index: 1, kind: input, shape index: {}]
  %s2 = inlined_call_operand.vmem [shape: f32[16,40], index: 2, kind: input, shape index: {}]
  %s3 = inlined_call_operand.vmem [shape: f32[16,1], index: 3, kind: input, shape index: {}]
  %s4 = inlined_call_operand.hbm [shape: f32[16,128], index: 4, kind: output, shape index: {}]
  %s5 = sld [smem:[#allocation0]]
  $region34: #{tpu_custom_call.1} parent=0
    _
  %s7 = ssub.s32 1, %s5
  %s8 = scalar_select 0, %s7, %s5
  $region1: #{tpu_custom_call.1} parent=0
    #allocation2 [shape = 'u8[4096]{0}', space=vmem, size = 0x1000, scoped, tag = 'input window, operand 0, single buffered']
    #allocation3 [shape = 's32[1]{0}', space=sflag, size = 0x4, scoped, tag = 'scoped memory for tpu_custom_call.1']
    #allocation4 [shape = 's32[1]{0}', space=sflag, size = 0x4, scoped, tag = 'scoped memory for tpu_custom_call.1']
    #allocation5 [shape = 'u8[131072]{0}', space=vmem, size = 0x20000, scoped, tag = 'input window, operand 1, single buffered']
    #allocation6 [shape = 's32[1]{0}', space=sflag, size = 0x4, scoped, tag = 'scoped memory for tpu_custom_call.1']
    #allocation7 [shape = 'u8[8192]{0}', space=vmem, size = 0x2000, scoped, tag = 'output window, operand 0, single buffered']
    %9 = vsyncpa [#allocation3], 0
    %10 = vsyncpa [#allocation6], 0
    %11 = vsyncpa [#allocation4], 0
    // Predicated region
    $region2: #{tpu_custom_call.1} parent=1 // pred_check
      _
    $region3: #{tpu_custom_call.1} parent=1 // pred_check_branch
      %13 = sbr.rel (0) target = $region5
    $region4: #{tpu_custom_call.1} parent=1 // pred_region
      %15 = vsyncadd [#allocation3], 0
      %s17 = sshll.u32 %s0, 4
      %s18 = int_to_ptr.hbm [resolvable:$true] %s17
      %s19 = sshll.u32 [#allocation2], 4
      %s20 = int_to_ptr.vmem [resolvable:$true] %s19
      %22 = dma.hbm_to_vmem [thread:$0]  %s18, 128, %s20, [#allocation3]
    $region5: #{tpu_custom_call.1} parent=1 // pred_fallthru
      _
    // Predicated region
    $region6: #{tpu_custom_call.1} parent=1 // pred_check
      _
    $region7: #{tpu_custom_call.1} parent=1 // pred_check_branch
      %24 = sbr.rel (0) target = $region9
    $region8: #{tpu_custom_call.1} parent=1 // pred_region
      %26 = vsyncadd [#allocation6], 0
      %s27 = sshll.u32 %s1, 4
      %s28 = int_to_ptr.hbm [resolvable:$true] %s27
      %s29 = sshll.u32 [#allocation5], 4
      %s30 = int_to_ptr.vmem [resolvable:$true] %s29
      %35 = dma.hbm_to_vmem [thread:$0]  %s28, 4096, %s30, [#allocation6], 128, 128, 8
    $region9: #{tpu_custom_call.1} parent=1 // pred_fallthru
      _
    // Predicated region
    $region10: #{tpu_custom_call.1} parent=1 // pred_check
      _
    $region11: #{tpu_custom_call.1} parent=1 // pred_check_branch
      %37 = sbr.rel (0) target = $region13
    $region12: #{tpu_custom_call.1} parent=1 // pred_region
      _
    $region13: #{tpu_custom_call.1} parent=1 // pred_fallthru
      _
    // Predicated region
    $region14: #{tpu_custom_call.1} parent=1 // pred_check
      _
    $region15: #{tpu_custom_call.1} parent=1 // pred_check_branch
      %39 = sbr.rel (0) target = $region17
    $region16: #{tpu_custom_call.1} parent=1 // pred_region
      _
    $region17: #{tpu_custom_call.1} parent=1 // pred_fallthru
      _
    // Predicated region
    $region18: #{tpu_custom_call.1} parent=1 // pred_check
      _
    $region19: #{tpu_custom_call.1} parent=1 // pred_check_branch
      %41 = sbr.rel (0) target = $region21
    $region20: #{tpu_custom_call.1} parent=1 // pred_region
      %43 = dma.done [#allocation3], 128
    $region21: #{tpu_custom_call.1} parent=1 // pred_fallthru
      _
    // Predicated region
    $region22: #{tpu_custom_call.1} parent=1 // pred_check
      _
    $region23: #{tpu_custom_call.1} parent=1 // pred_check_branch
      %45 = sbr.rel (0) target = $region25
    $region24: #{tpu_custom_call.1} parent=1 // pred_region
      %47 = dma.done [#allocation6], 4096
    $region25: #{tpu_custom_call.1} parent=1 // pred_fallthru
      _
    %v48 = vld [vmem:[#allocation2] sm:$0xff]
    %v49 = vld [vmem:[#allocation5] sm:$0xff]
    %v50 = vld [vmem:[#allocation5 + $0x8] sm:$0xff]
    %v51 = vld [vmem:[#allocation5 + $0x10] sm:$0xff]
    %v52 = vld [vmem:[#allocation5 + $0x18] sm:$0xff]
    %v53 = vld [vmem:[#allocation5 + $0x20] sm:$0xff]
    %v54 = vld [vmem:[#allocation5 + $0x28] sm:$0xff]
    %v55 = vld [vmem:[#allocation5 + $0x30] sm:$0xff]
    %v56 = vld [vmem:[#allocation5 + $0x38] sm:$0xff]
    %v57 = vld [vmem:[#allocation5 + $0x40] sm:$0xff]
    %v58 = vld [vmem:[#allocation5 + $0x48] sm:$0xff]
    %v59 = vld [vmem:[#allocation5 + $0x50] sm:$0xff]
    %v60 = vld [vmem:[#allocation5 + $0x58] sm:$0xff]
    %v61 = vld [vmem:[#allocation5 + $0x60] sm:$0xff]
    %v62 = vld [vmem:[#allocation5 + $0x68] sm:$0xff]
    %v63 = vld [vmem:[#allocation5 + $0x70] sm:$0xff]
    %v64 = vld [vmem:[#allocation5 + $0x78] sm:$0xff]
    %65 = vmatpush.msra.mxu0 %v64
    %66 = vmatpush.msra.mxu0 %v63
    %67 = vmatpush.msra.mxu0 %v62
    %68 = vmatpush.msra.mxu0 %v61
    %69 = vmatpush.msra.mxu0 %v60
    %70 = vmatpush.msra.mxu0 %v59
    %71 = vmatpush.msra.mxu0 %v58
    %72 = vmatpush.msra.mxu0 %v57
    %73 = vmatpush.msra.mxu0 %v56
    %74 = vmatpush.msra.mxu0 %v55
    %75 = vmatpush.msra.mxu0 %v54
    %76 = vmatpush.msra.mxu0 %v53
    %77 = vmatpush.msra.mxu0 %v52
    %78 = vmatpush.msra.mxu0 %v51
    %79 = vmatpush.msra.mxu0 %v50
    %80 = vmatpush.msra.mxu0 %v49
    %81 = vmatmul.f32.gmra.mxu0 %v48
    %v82 = vpop.f32.mrf.mxu0
    %v83 = vadd.f32 0.0, %v82
    %84 = vdwg.mxu0
    %85 = vmatpush.msra.mxu0 %v64
    %86 = vmatpush.msra.mxu0 %v63
    %87 = vmatpush.msra.mxu0 %v62
    %88 = vmatpush.msra.mxu0 %v61
    %89 = vmatpush.msra.mxu0 %v60
    %90 = vmatpush.msra.mxu0 %v59
    %91 = vmatpush.msra.mxu0 %v58
    %92 = vmatpush.msra.mxu0 %v57
    %93 = vmatpush.msra.mxu0 %v56
    %94 = vmatpush.msra.mxu0 %v55
    %95 = vmatpush.msra.mxu0 %v54
    %96 = vmatpush.msra.mxu0 %v53
    %97 = vmatpush.msra.mxu0 %v52
    %98 = vmatpush.msra.mxu0 %v51
    %99 = vmatpush.msra.mxu0 %v50
    %100 = vmatpush.msra.mxu0 %v49
    %101 = vmatmul.f32.gmra.mxu0 %v83
    %v102 = vpop.f32.mrf.mxu0
    %v103 = vadd.f32 0.0, %v102
    %104 = vdwg.mxu0
    %v105 = vmul.f32 %v103, 2.0
    %v106 = vsub.f32 %v105, %v48
    %s107 = scalar_lea.vmem [#allocation5], 128
    %v108 = vld [vmem:[%s107] sm:$0xff]
    %v109 = vld [vmem:[%s107 + $0x8] sm:$0xff]
    %v110 = vld [vmem:[%s107 + $0x10] sm:$0xff]
    %v111 = vld [vmem:[%s107 + $0x18] sm:$0xff]
    %v112 = vld [vmem:[%s107 + $0x20] sm:$0xff]
    %v113 = vld [vmem:[%s107 + $0x28] sm:$0xff]
    %v114 = vld [vmem:[%s107 + $0x30] sm:$0xff]
    %v115 = vld [vmem:[%s107 + $0x38] sm:$0xff]
    %v116 = vld [vmem:[%s107 + $0x40] sm:$0xff]
    %v117 = vld [vmem:[%s107 + $0x48] sm:$0xff]
    %v118 = vld [vmem:[%s107 + $0x50] sm:$0xff]
    %v119 = vld [vmem:[%s107 + $0x58] sm:$0xff]
    %v120 = vld [vmem:[%s107 + $0x60] sm:$0xff]
    %v121 = vld [vmem:[%s107 + $0x68] sm:$0xff]
    %v122 = vld [vmem:[%s107 + $0x70] sm:$0xff]
    %v123 = vld [vmem:[%s107 + $0x78] sm:$0xff]
    %124 = vmatpush.msra.mxu0 %v123
    %125 = vmatpush.msra.mxu0 %v122
    %126 = vmatpush.msra.mxu0 %v121
    %127 = vmatpush.msra.mxu0 %v120
    %128 = vmatpush.msra.mxu0 %v119
    %129 = vmatpush.msra.mxu0 %v118
    %130 = vmatpush.msra.mxu0 %v117
    %131 = vmatpush.msra.mxu0 %v116
    %132 = vmatpush.msra.mxu0 %v115
    %133 = vmatpush.msra.mxu0 %v114
    %134 = vmatpush.msra.mxu0 %v113
    %135 = vmatpush.msra.mxu0 %v112
    %136 = vmatpush.msra.mxu0 %v111
    %137 = vmatpush.msra.mxu0 %v110
    %138 = vmatpush.msra.mxu0 %v109
    %139 = vmatpush.msra.mxu0 %v108
    %140 = vmatmul.f32.gmra.mxu0 %v83
    %v141 = vpop.f32.mrf.mxu0
    %v142 = vadd.f32 0.0, %v141
    %143 = vdwg.mxu0
    %144 = vmatpush.msra.mxu0 %v123
    %145 = vmatpush.msra.mxu0 %v122
    %146 = vmatpush.msra.mxu0 %v121
    %147 = vmatpush.msra.mxu0 %v120
    %148 = vmatpush.msra.mxu0 %v119
    %149 = vmatpush.msra.mxu0 %v118
    %150 = vmatpush.msra.mxu0 %v117
    %151 = vmatpush.msra.mxu0 %v116
    %152 = vmatpush.msra.mxu0 %v115
    %153 = vmatpush.msra.mxu0 %v114
    %154 = vmatpush.msra.mxu0 %v113
    %155 = vmatpush.msra.mxu0 %v112
    %156 = vmatpush.msra.mxu0 %v111
    %157 = vmatpush.msra.mxu0 %v110
    %158 = vmatpush.msra.mxu0 %v109
    %159 = vmatpush.msra.mxu0 %v108
    %160 = vmatmul.f32.gmra.mxu0 %v142
    %v161 = vpop.f32.mrf.mxu0
    %v162 = vadd.f32 0.0, %v161
    %163 = vdwg.mxu0
    %v164 = vmul.f32 %v162, 2.0
    %v165 = vsub.f32 %v164, %v83
    %v166 = vld [vmem:[%s2] sm:$0xff]
    %v167 = vld [vmem:[%s2 + $0x8] sm:$0xff]
    %v168 = vld [vmem:[%s3] sm:$0xff]
    %v169 = vld [vmem:[%s3 + $0x8] sm:$0xff]
    %171 = vset.pattern.permute.xlu0 0
    %172 = vperm.xlu0 %171, %v168
    %v173 = vpop.permute.xlu0 %172
    %176 = vset.pattern.permute.xlu0 0
    %177 = vperm.xlu0 %176, %v169
    %v178 = vpop.permute.xlu0 %177
    %vm180 = vcmask 326656
    %v182 = vsel %vm180, %v166, 0
    %v185 = vsel %vm180, %v167, 0
    %187 = vmatpush.msra.mxu0 0.0
    %188 = vmatpush.msra.mxu0 0.0
    %189 = vmatpush.msra.mxu0 0.0
    %190 = vmatpush.msra.mxu0 0.0
    %191 = vmatpush.msra.mxu0 0.0
    %192 = vmatpush.msra.mxu0 0.0
    %193 = vmatpush.msra.mxu0 0.0
    %194 = vmatpush.msra.mxu0 0.0
    %195 = vmatpush.msra.mxu0 0.0
    %196 = vmatpush.msra.mxu0 0.0
    %197 = vmatpush.msra.mxu0 0.0
    %198 = vmatpush.msra.mxu0 %v165
    %199 = vmatpush.msra.mxu0 %v142
    %200 = vmatpush.msra.mxu0 %v106
    %201 = vmatpush.msra.mxu0 %v83
    %202 = vmatpush.msra.mxu0 %v48
    %203 = vmatmul.f32.gmra.mxu0 %v182
    %v204 = vpop.f32.mrf.mxu0
    %v205 = vadd.f32 %v173, %v204
    %206 = vmatmul.f32.gmra.mxu0 %v185
    %v207 = vpop.f32.mrf.mxu0
    %v208 = vadd.f32 %v178, %v207
    %209 = vdwg.mxu0
    %210 = vst [vmem:[#allocation7] sm:$0xff] %v205
    %211 = vst [vmem:[#allocation7 + $0x8] sm:$0xff] %v208
    // Predicated region
    $region26: #{tpu_custom_call.1} parent=1 // pred_check
      _
    $region27: #{tpu_custom_call.1} parent=1 // pred_check_branch
      %213 = sbr.rel (0) target = $region29
    $region28: #{tpu_custom_call.1} parent=1 // pred_region
      %215 = vsyncadd [#allocation4], 0
      %s216 = sshll.u32 [#allocation7], 4
      %s217 = int_to_ptr.vmem [resolvable:$true] %s216
      %s218 = sshll.u32 %s4, 4
      %s219 = int_to_ptr.hbm [resolvable:$true] %s218
      %224 = dma.vmem_to_hbm [thread:$0]  %s217, 256, %s219, [#allocation4], 128, 128, 8
    $region29: #{tpu_custom_call.1} parent=1 // pred_fallthru
      _
    // Predicated region
    $region30: #{tpu_custom_call.1} parent=1 // pred_check
      _
    $region31: #{tpu_custom_call.1} parent=1 // pred_check_branch
      %226 = sbr.rel (0) target = $region33
    $region32: #{tpu_custom_call.1} parent=1 // pred_region
      %228 = dma.done [#allocation4], 256
    $region33: #{tpu_custom_call.1} parent=1 // pred_fallthru
      _
    %229 = vsyncpa [#allocation3], 1
    %230 = vsyncpa [#allocation6], 1
    %231 = vsyncpa [#allocation4], 1

</llo_original>
